<compile_context>
chip_gen: v7x
topology: tpu7x:2x2x1
jax: 0.10.0
libtpu: 0.0.40
codegen_flags: <defaults>
</compile_context>

<pallas_src>
from typing import List, NamedTuple, Tuple

import jax
import jax.numpy as jnp
from jax.experimental import pallas as pl
from jax.experimental.pallas import tpu as pltpu


def _round_up(n: int, m: int) -> int:
    return ((n + m - 1) // m) * m


# -----------------------------------------------------------------------------
# Kernel
# -----------------------------------------------------------------------------
def _dqn_mlp_kernel(x_ref, w_ref, b_ref, o_ref):
    """Fused MLP forward on one batch tile.

    x_ref : (TB, P)   bf16 input tile (features zero-padded to P lanes)
    w_ref : (L, P, P) bf16 packed, zero-padded weight slab (VMEM-resident)
    b_ref : (8, P)    f32 packed biases (row l = layer l; padded action lanes
                      of the last row hold -1e30 so softmax ignores them)
    o_ref : (TB, P)   lane-dense softmax output tile (bf16)
    """
    num_layers = w_ref.shape[0]
    b_all = b_ref[...]                       # (8, P) f32 — tiny, load once
    h = x_ref[...]                           # bf16 rows feed the MXU directly

    # Hidden layers: bf16 matmul (f32 accumulate) + bias + ReLU, unrolled.
    for l in range(num_layers - 1):
        acc = jnp.dot(h, w_ref[l], preferred_element_type=jnp.float32)
        acc = jnp.maximum(acc + b_all[l:l + 1, :], 0.0)
        h = acc.astype(jnp.bfloat16)         # bf16 feed for the next MXU pass

    # Output layer: keep logits / softmax entirely in f32.
    logits = jnp.dot(h, w_ref[num_layers - 1],
                     preferred_element_type=jnp.float32)
    logits = logits + b_all[num_layers - 1:num_layers, :]

    # Softmax over action lanes (padded lanes carry -1e30 bias -> exp == 0).
    m = jnp.max(logits, axis=-1, keepdims=True)
    e = jnp.exp(logits - m)
    s = jnp.sum(e, axis=-1, keepdims=True)
    o_ref[...] = (e * pl.reciprocal(s, approx=True)).astype(o_ref.dtype)


# -----------------------------------------------------------------------------
# Parameter packing (done ONCE per parameter update, not per forward call)
# -----------------------------------------------------------------------------
class PackedDQNParams(NamedTuple):
    w_slab: jax.Array      # (L, P, P) bfloat16
    b_slab: jax.Array      # (8, P)    float32
    input_size: int
    output_size: int


def pack_dqn_params(params: List[Tuple[jax.Array, jax.Array]]) -> PackedDQNParams:
    """Pack per-layer (w, b) into one bf16 weight slab and one f32 bias slab."""
    num_layers = len(params)
    in_size = params[0][0].shape[0]
    out_size = params[-1][0].shape[1]

    dims = [in_size] + [w.shape[1] for w, _ in params]
    pdim = _round_up(max(dims), 128)          # common lane-padded width

    w_slab = jnp.zeros((num_layers, pdim, pdim), jnp.bfloat16)
    b_slab = jnp.zeros((max(num_layers, 8), pdim), jnp.float32)
    for l, (w, b) in enumerate(params):
        k, n = w.shape
        w_slab = w_slab.at[l, :k, :n].set(w.astype(jnp.bfloat16))
        b_slab = b_slab.at[l, :n].set(b.reshape(-1).astype(jnp.float32))

    # Mask padded action lanes of the final layer (f32 keeps -1e30 finite).
    if out_size < pdim:
        b_slab = b_slab.at[num_layers - 1, out_size:].set(-1e30)

    return PackedDQNParams(w_slab, b_slab, in_size, out_size)


# -----------------------------------------------------------------------------
# Forward wrapper
# -----------------------------------------------------------------------------
def dqn_forward(x, packed: PackedDQNParams, *, tile_batch=512,
                out_dtype=jnp.bfloat16, return_padded=False):
    """Run the fused DQN MLP forward pass via one gridded pallas_call."""
    batch, in_size = x.shape
    assert in_size == packed.input_size
    num_layers, pdim, _ = packed.w_slab.shape
    out_size = packed.output_size

    # Pick the batch tile: as large as requested, but (a) 16-aligned for bf16
    # sublane packing and (b) clamped to ~half the batch so the grid has at
    # least 2 steps -> both v7x TensorCores get work (no-op on v5e/v6e).
    half = _round_up(max(pl.cdiv(batch, 2), 16), 16)
    tb = max(16, min(_round_up(tile_batch, 16), half))
    pb = _round_up(max(batch, tb), tb)

    # Single-op pad of the input (bf16 halves the HBM read of the tile).
    x_pad = jnp.pad(x.astype(jnp.bfloat16),
                    ((0, pb - batch), (0, pdim - in_size)))

    grid = (pb // tb,)

    out_padded = pl.pallas_call(
        _dqn_mlp_kernel,
        out_shape=jax.ShapeDtypeStruct((pb, pdim), out_dtype),
        grid=grid,
        in_specs=[
            # Batch-tiled input: double-buffered across the grid.
            pl.BlockSpec((tb, pdim), lambda i: (i, 0)),
            # Weights/biases: constant block index -> VMEM-resident, DMA'd once.
            pl.BlockSpec((num_layers, pdim, pdim), lambda i: (0, 0, 0)),
            pl.BlockSpec((packed.b_slab.shape[0], pdim), lambda i: (0, 0)),
        ],
        out_specs=pl.BlockSpec((tb, pdim), lambda i: (i, 0)),
        compiler_params=pltpu.CompilerParams(
            dimension_semantics=("parallel",),   # v7x: both TCs split the batch
        ),
    )(x_pad, packed.w_slab, packed.b_slab)

    if return_padded:
        # Let the consumer fuse the [:batch, :out_size] slice (no extra HBM pass).
        return out_padded
    return out_padded[:batch, :out_size]


# -----------------------------------------------------------------------------
# Init + reference
# -----------------------------------------------------------------------------
def init_params(key, input_size, layer_sizes, output_size):
    """Deterministic init mirroring nn.Linear default (uniform +/- 1/sqrt(fan_in))."""
    sizes = [input_size] + list(layer_sizes) + [output_size]
    params = []
    for i in range(len(sizes) - 1):
        key, kw, kb = jax.random.split(key, 3)
        bound = 1.0 / jnp.sqrt(jnp.float32(sizes[i]))
        w = jax.random.uniform(kw, (sizes[i], sizes[i + 1]), jnp.float32,
                               minval=-bound, maxval=bound)
        b = jax.random.uniform(kb, (1, sizes[i + 1]), jnp.float32,
                               minval=-bound, maxval=bound)
        params.append((w, b))
    return params


def reference_forward(x, params):
    """Pure-JAX f32 reference for correctness check."""
    h = x
    for w, b in params[:-1]:
        h = jnp.maximum(h @ w + b, 0.0)
    w, b = params[-1]
    return jax.nn.softmax(h @ w + b, axis=-1)


if __name__ == "__main__":
    # DQN-sized layers; batch large enough to exercise a 2-step batch grid
    # (2 tiles of 128 rows) while staying tiny overall.
    batch = 256
    input_size = 16
    layer_sizes = [32, 32, 32]
    output_size = 4

    key = jax.random.PRNGKey(0)
    key, kx = jax.random.split(key)
    x = jax.random.normal(kx, (batch, input_size), dtype=jnp.float32)
    params = init_params(key, input_size, layer_sizes, output_size)

    # Pack once per parameter update (hoisted out of the per-forward path).
    packed = pack_dqn_params(params)
    packed = jax.tree_util.tree_map(
        lambda a: jax.block_until_ready(a) if isinstance(a, jax.Array) else a,
        packed)

    out = dqn_forward(x, packed)
    out = jax.block_until_ready(out)

    ref = reference_forward(x, params)
    assert out.shape == (batch, output_size)
    # bf16 MXU inputs + bf16 output store + approx EUP reciprocal -> ~1e-2
    # agreement with the f32 reference; argmax/action selection is unaffected.
    assert jnp.allclose(out.astype(jnp.float32), ref, atol=2e-2, rtol=2e-2), \
        "mismatch vs reference"

    print("KERNEL_OK")
</pallas_src>

<mosaic_0001>
module attributes {stable_mosaic.version = 11 : i64} {
  func.func @_dqn_mlp_kernel(%arg0: i32, %arg1: memref<128x128xbf16, #tpu.memory_space<vmem>>, %arg2: memref<4x128x128xbf16, #tpu.memory_space<vmem>>, %arg3: memref<8x128xf32, #tpu.memory_space<vmem>>, %arg4: memref<128x128xbf16, #tpu.memory_space<vmem>>) attributes {dimension_semantics = [#tpu.dimension_semantics<parallel>], iteration_bounds = array<i64: 2>, scalar_prefetch = 0 : i64, scratch_operands = 0 : i64, tpu.core_type = #tpu.core_type<tc>, window_params = [{transform_indices = @transform_0, window_bounds = array<i64: 128, 128>}, {pipeline_mode = #tpu.pipeline_mode<synchronous>, transform_indices = @transform_1, window_bounds = array<i64: 4, 128, 128>}, {pipeline_mode = #tpu.pipeline_mode<synchronous>, transform_indices = @transform_2, window_bounds = array<i64: 8, 128>}, {transform_indices = @transform_3, window_bounds = array<i64: 128, 128>}]} {
    %c0 = arith.constant 0 : index
    %c0_0 = arith.constant 0 : index
    %0 = vector.load %arg3[%c0, %c0_0] : memref<8x128xf32, #tpu.memory_space<vmem>>, vector<8x128xf32>
    %c0_1 = arith.constant 0 : index
    %c0_2 = arith.constant 0 : index
    %1 = vector.load %arg1[%c0_1, %c0_2] : memref<128x128xbf16, #tpu.memory_space<vmem>>, vector<128x128xbf16>
    %c0_3 = arith.constant 0 : index
    %c0_4 = arith.constant 0 : index
    %c0_5 = arith.constant 0 : index
    %2 = vector.load %arg2[%c0_3, %c0_4, %c0_5] : memref<4x128x128xbf16, #tpu.memory_space<vmem>>, vector<1x128x128xbf16>
    %3 = vector.shape_cast %2 : vector<1x128x128xbf16> to vector<128x128xbf16>
    %cst = arith.constant dense<0.000000e+00> : vector<128x128xf32>
    %4 = tpu.matmul %1, %3, %cst {dimension_numbers = #tpu.dot_dimension_numbers<[1], [0], [0], [1], [0, 0, 1, 1], [], []>} : vector<128x128xbf16>, vector<128x128xbf16>, vector<128x128xf32> -> vector<128x128xf32>
    %5 = vector.extract_strided_slice %0 {offsets = [0, 0], sizes = [1, 128], strides = [1, 1]} : vector<8x128xf32> to vector<1x128xf32>
    %6 = vector.broadcast %5 : vector<1x128xf32> to vector<128x128xf32>
    %7 = arith.addf %4, %6 : vector<128x128xf32>
    %cst_6 = arith.constant 0.000000e+00 : f32
    %8 = vector.broadcast %cst_6 : f32 to vector<128x128xf32>
    %9 = arith.maximumf %7, %8 : vector<128x128xf32>
    %10 = arith.truncf %9 : vector<128x128xf32> to vector<128x128xbf16>
    %c1 = arith.constant 1 : index
    %c0_7 = arith.constant 0 : index
    %c0_8 = arith.constant 0 : index
    %11 = vector.load %arg2[%c1, %c0_7, %c0_8] : memref<4x128x128xbf16, #tpu.memory_space<vmem>>, vector<1x128x128xbf16>
    %12 = vector.shape_cast %11 : vector<1x128x128xbf16> to vector<128x128xbf16>
    %cst_9 = arith.constant dense<0.000000e+00> : vector<128x128xf32>
    %13 = tpu.matmul %10, %12, %cst_9 {dimension_numbers = #tpu.dot_dimension_numbers<[1], [0], [0], [1], [0, 0, 1, 1], [], []>} : vector<128x128xbf16>, vector<128x128xbf16>, vector<128x128xf32> -> vector<128x128xf32>
    %14 = vector.extract_strided_slice %0 {offsets = [1, 0], sizes = [1, 128], strides = [1, 1]} : vector<8x128xf32> to vector<1x128xf32>
    %15 = vector.broadcast %14 : vector<1x128xf32> to vector<128x128xf32>
    %16 = arith.addf %13, %15 : vector<128x128xf32>
    %cst_10 = arith.constant 0.000000e+00 : f32
    %17 = vector.broadcast %cst_10 : f32 to vector<128x128xf32>
    %18 = arith.maximumf %16, %17 : vector<128x128xf32>
    %19 = arith.truncf %18 : vector<128x128xf32> to vector<128x128xbf16>
    %c2 = arith.constant 2 : index
    %c0_11 = arith.constant 0 : index
    %c0_12 = arith.constant 0 : index
    %20 = vector.load %arg2[%c2, %c0_11, %c0_12] : memref<4x128x128xbf16, #tpu.memory_space<vmem>>, vector<1x128x128xbf16>
    %21 = vector.shape_cast %20 : vector<1x128x128xbf16> to vector<128x128xbf16>
    %cst_13 = arith.constant dense<0.000000e+00> : vector<128x128xf32>
    %22 = tpu.matmul %19, %21, %cst_13 {dimension_numbers = #tpu.dot_dimension_numbers<[1], [0], [0], [1], [0, 0, 1, 1], [], []>} : vector<128x128xbf16>, vector<128x128xbf16>, vector<128x128xf32> -> vector<128x128xf32>
    %23 = vector.extract_strided_slice %0 {offsets = [2, 0], sizes = [1, 128], strides = [1, 1]} : vector<8x128xf32> to vector<1x128xf32>
    %24 = vector.broadcast %23 : vector<1x128xf32> to vector<128x128xf32>
    %25 = arith.addf %22, %24 : vector<128x128xf32>
    %cst_14 = arith.constant 0.000000e+00 : f32
    %26 = vector.broadcast %cst_14 : f32 to vector<128x128xf32>
    %27 = arith.maximumf %25, %26 : vector<128x128xf32>
    %28 = arith.truncf %27 : vector<128x128xf32> to vector<128x128xbf16>
    %c3 = arith.constant 3 : index
    %c0_15 = arith.constant 0 : index
    %c0_16 = arith.constant 0 : index
    %29 = vector.load %arg2[%c3, %c0_15, %c0_16] : memref<4x128x128xbf16, #tpu.memory_space<vmem>>, vector<1x128x128xbf16>
    %30 = vector.shape_cast %29 : vector<1x128x128xbf16> to vector<128x128xbf16>
    %cst_17 = arith.constant dense<0.000000e+00> : vector<128x128xf32>
    %31 = tpu.matmul %28, %30, %cst_17 {dimension_numbers = #tpu.dot_dimension_numbers<[1], [0], [0], [1], [0, 0, 1, 1], [], []>} : vector<128x128xbf16>, vector<128x128xbf16>, vector<128x128xf32> -> vector<128x128xf32>
    %32 = vector.extract_strided_slice %0 {offsets = [3, 0], sizes = [1, 128], strides = [1, 1]} : vector<8x128xf32> to vector<1x128xf32>
    %33 = vector.broadcast %32 : vector<1x128xf32> to vector<128x128xf32>
    %34 = arith.addf %31, %33 : vector<128x128xf32>
    %cst_18 = arith.constant dense<0xFF800000> : vector<128xf32>
    %35 = vector.multi_reduction <maximumf>, %34, %cst_18 [1] : vector<128x128xf32> to vector<128xf32>
    %36 = vector.shape_cast %35 : vector<128xf32> to vector<128x1xf32>
    %37 = vector.broadcast %36 : vector<128x1xf32> to vector<128x128xf32>
    %38 = arith.subf %34, %37 : vector<128x128xf32>
    %39 = math.exp %38 : vector<128x128xf32>
    %cst_19 = arith.constant dense<0.000000e+00> : vector<128xf32>
    %40 = vector.multi_reduction <add>, %39, %cst_19 [1] : vector<128x128xf32> to vector<128xf32>
    %41 = vector.shape_cast %40 : vector<128xf32> to vector<128x1xf32>
    %42 = tpu.reciprocal %41 {approx = true} : vector<128x1xf32> -> vector<128x1xf32>
    %43 = vector.broadcast %42 : vector<128x1xf32> to vector<128x128xf32>
    %44 = arith.mulf %39, %43 : vector<128x128xf32>
    %45 = arith.truncf %44 : vector<128x128xf32> to vector<128x128xbf16>
    %c0_20 = arith.constant 0 : index
    %c0_21 = arith.constant 0 : index
    %46 = vector.load %arg4[%c0_20, %c0_21] : memref<128x128xbf16, #tpu.memory_space<vmem>>, vector<128x128xbf16>
    tpu.vector_store %arg4[%c0_20, %c0_21], %45 {strides = array<i32>} : memref<128x128xbf16, #tpu.memory_space<vmem>>, vector<128x128xbf16>,
    return
  }
  func.func @transform_0(%arg0: i32) -> (i32, i32) {
    %c0_i32 = arith.constant 0 : i32
    %c0_i32_0 = arith.constant 0 : i32
    return %arg0, %c0_i32 : i32, i32
  }
  func.func @transform_1(%arg0: i32) -> (i32, i32, i32) {
    %c0_i32 = arith.constant 0 : i32
    %c0_i32_0 = arith.constant 0 : i32
    %c0_i32_1 = arith.constant 0 : i32
    %c0_i32_2 = arith.constant 0 : i32
    return %c0_i32, %c0_i32_0, %c0_i32_1 : i32, i32, i32
  }
  func.func @transform_2(%arg0: i32) -> (i32, i32) {
    %c0_i32 = arith.constant 0 : i32
    %c0_i32_0 = arith.constant 0 : i32
    %c0_i32_1 = arith.constant 0 : i32
    return %c0_i32, %c0_i32_0 : i32, i32
  }
  func.func @transform_3(%arg0: i32) -> (i32, i32) {
    %c0_i32 = arith.constant 0 : i32
    %c0_i32_0 = arith.constant 0 : i32
    return %arg0, %c0_i32 : i32, i32
  }
}

</mosaic_0001>

<llo_original>
// kernel: tpu_custom_call.1
$region0: #{tpu_custom_call.1}
  #allocation0 [shape = 'u32[]', space=smem, size = 0x4, offset = 0x4, fixed_abs, tag = 'smem constant byte address 0x4 - core index']
  #allocation1 [shape = 'u32[144,128]{1,0:T(1,128)}', space=vmem, size = 0x12000, scoped, tag = 'internal scratch']
  %s0 = inlined_call_operand.hbm [shape: bf16[256,128], index: 0, kind: input, shape index: {}]
  %s1 = inlined_call_operand.hbm [shape: bf16[4,128,128], index: 1, kind: input, shape index: {}]
  %s2 = inlined_call_operand.hbm [shape: f32[8,128], index: 2, kind: input, shape index: {}]
  %s3 = inlined_call_operand.hbm [shape: bf16[256,128], index: 3, kind: output, shape index: {}]
  %s4 = sld [smem:[#allocation0]]
  $region57: #{tpu_custom_call.1} parent=0
    _
  %s6 = ssub.s32 1, %s4
  %s7 = scalar_select 0, %s6, %s4
  $region1: #{tpu_custom_call.1} parent=0
    #allocation2 [shape = 'u8[65536]{0}', space=vmem, size = 0x10000, scoped, tag = 'input window, operand 0']
    #allocation3 [shape = 's32[2]{0}', space=sflag, size = 0x8, scoped, tag = 'scoped memory for tpu_custom_call.1']
    #allocation4 [shape = 's32[2]{0}', space=sflag, size = 0x8, scoped, tag = 'scoped memory for tpu_custom_call.1']
    #allocation5 [shape = 'u8[131072]{0}', space=vmem, size = 0x20000, scoped, tag = 'input window, operand 1, single buffered']
    #allocation6 [shape = 's32[1]{0}', space=sflag, size = 0x4, scoped, tag = 'scoped memory for tpu_custom_call.1']
    #allocation7 [shape = 'u8[4096]{0}', space=vmem, size = 0x1000, scoped, tag = 'input window, operand 2, single buffered']
    #allocation8 [shape = 'u8[65536]{0}', space=vmem, size = 0x10000, scoped, tag = 'output window, operand 0']
    %8 = vsyncpa [#allocation3], 0
    %s9 = scalar_lea.sflag [#allocation3], 1
    %10 = vsyncpa %s9, 0
    %11 = vsyncpa [#allocation6], 0
    %12 = vsyncpa [#allocation4], 0
    %s13 = scalar_lea.sflag [#allocation4], 1
    %14 = vsyncpa %s13, 0
    loop: start=0, step=1, limit=4
    $region2: #{tpu_custom_call.1} parent=1 // loop_pre_header
      _
    $region3: #{tpu_custom_call.1} parent=1 // loop_header
      %s16 = sphi 0, %s20
      %p17 = scmp.ge.s32.totalorder %s16, 4
      %s26 = sphi 0, %s28
      %s29 = sphi 0, %s26
      %s30 = sphi 0, %s29
      %s46 = sphi 0, %s30
      %s50 = sphi 0, %s50
      %s52 = sphi 0, %s50
      %s53 = sphi 0, %s52
      %s67 = sphi 0, %s53
      %s71 = sphi 0, %s71
      %s73 = sphi 0, %s71
      %s74 = sphi 0, %s73
      %s88 = sphi 0, %s74
      %s94 = sphi 0, %s96
      %s97 = sphi 0, %s94
      %s98 = sphi 0, %s97
      %s114 = sphi 0, %s98
    $region4: #{tpu_custom_call.1} parent=1 // loop_header_branch
      %19 = sbr.rel (%p17) target = $region8
    $region5: #{tpu_custom_call.1} parent=1 // loop_body
      %s21 = ssub.s32 %s16, 1
      %s22 = ssub.s32 %s16, 2
      %s23 = sadd.s32 %s16, 1
      %s24 = ssub.s32 %s16, %s23
      %p25 = scmp.eq.s32.totalorder %s24, 0
      %s27 = sadd.s32 %s26, 1
      %s28 = scalar_select %p25, %s26, %s27
      %p31 = pneg %p25
      %p32 = scmp.eq.s32.totalorder %s16, 1
      %p33 = por %p31, %p32
      %p34 = scmp.ne.s32.totalorder %s26, %s29
      %p35 = scmp.eq.s32.totalorder %s16, 0
      %p36 = por %p34, %p35
      %p37 = scmp.ne.s32.totalorder %s26, %s29
      %p38 = scmp.eq.s32.totalorder %s21, 1
      %p39 = por %p37, %p38
      %p40 = scmp.ne.s32.totalorder %s29, %s30
      %p41 = scmp.eq.s32.totalorder %s21, 0
      %p42 = por %p40, %p41
      %p43 = scmp.ne.s32.totalorder %s29, %s30
      %p44 = scmp.eq.s32.totalorder %s22, 1
      %p45 = por %p43, %p44
      %p47 = scmp.ne.s32.totalorder %s30, %s46
      %p48 = scmp.eq.s32.totalorder %s22, 0
      %p49 = por %p47, %p48
      %s51 = sadd.s32 %s50, 1
      %p54 = scmp.eq.s32.totalorder %s16, 1
      %p55 = scmp.ne.s32.totalorder %s50, %s52
      %p56 = scmp.eq.s32.totalorder %s16, 0
      %p57 = por %p55, %p56
      %p58 = scmp.ne.s32.totalorder %s50, %s52
      %p59 = scmp.eq.s32.totalorder %s21, 1
      %p60 = por %p58, %p59
      %p61 = scmp.ne.s32.totalorder %s52, %s53
      %p62 = scmp.eq.s32.totalorder %s21, 0
      %p63 = por %p61, %p62
      %p64 = scmp.ne.s32.totalorder %s52, %s53
      %p65 = scmp.eq.s32.totalorder %s22, 1
      %p66 = por %p64, %p65
      %p68 = scmp.ne.s32.totalorder %s53, %s67
      %p69 = scmp.eq.s32.totalorder %s22, 0
      %p70 = por %p68, %p69
      %s72 = sadd.s32 %s71, 1
      %p75 = scmp.eq.s32.totalorder %s16, 1
      %p76 = scmp.ne.s32.totalorder %s71, %s73
      %p77 = scmp.eq.s32.totalorder %s16, 0
      %p78 = por %p76, %p77
      %p79 = scmp.ne.s32.totalorder %s71, %s73
      %p80 = scmp.eq.s32.totalorder %s21, 1
      %p81 = por %p79, %p80
      %p82 = scmp.ne.s32.totalorder %s73, %s74
      %p83 = scmp.eq.s32.totalorder %s21, 0
      %p84 = por %p82, %p83
      %p85 = scmp.ne.s32.totalorder %s73, %s74
      %p86 = scmp.eq.s32.totalorder %s22, 1
      %p87 = por %p85, %p86
      %p89 = scmp.ne.s32.totalorder %s74, %s88
      %p90 = scmp.eq.s32.totalorder %s22, 0
      %p91 = por %p89, %p90
      %s92 = ssub.s32 %s16, %s23
      %p93 = scmp.eq.s32.totalorder %s92, 0
      %s95 = sadd.s32 %s94, 1
      %s96 = scalar_select %p93, %s94, %s95
      %p99 = pneg %p93
      %p100 = scmp.eq.s32.totalorder %s16, 1
      %p101 = por %p99, %p100
      %p102 = scmp.ne.s32.totalorder %s94, %s97
      %p103 = scmp.eq.s32.totalorder %s16, 0
      %p104 = por %p102, %p103
      %p105 = scmp.ne.s32.totalorder %s94, %s97
      %p106 = scmp.eq.s32.totalorder %s21, 1
      %p107 = por %p105, %p106
      %p108 = scmp.ne.s32.totalorder %s97, %s98
      %p109 = scmp.eq.s32.totalorder %s21, 0
      %p110 = por %p108, %p109
      %p111 = scmp.ne.s32.totalorder %s97, %s98
      %p112 = scmp.eq.s32.totalorder %s22, 1
      %p113 = por %p111, %p112
      %p115 = scmp.ne.s32.totalorder %s98, %s114
      %p116 = scmp.eq.s32.totalorder %s22, 0
      %p117 = por %p115, %p116
      %p118 = scmp.le.s32.totalorder 1, %s16
      %p119 = scmp.lt.s32.totalorder %s16, 3
      %p120 = pnand %p118, %p119
      %p121 = pneg %p120
      // Predicated region
      $region9: #{tpu_custom_call.1} parent=5 // pred_check
        _
      $region10: #{tpu_custom_call.1} parent=5 // pred_check_branch
        %123 = sbr.rel (%p120) target = $region12
      $region11: #{tpu_custom_call.1} parent=5 // pred_region
        %s124 = ssub.s32 %s16, 1
        // Predicated region
        $region13: #{tpu_custom_call.1} parent=11 // pred_check
          %p125 = pneg %p63
        $region14: #{tpu_custom_call.1} parent=11 // pred_check_branch
          %127 = sbr.rel (%p125) target = $region16
        $region15: #{tpu_custom_call.1} parent=11 // pred_region
          %s129 = ssub.s32 4096, 4096
          %130 = vsyncadd [#allocation6], %s129
          %s131 = sshll.u32 [#allocation5], 4
          %s132 = int_to_ptr.vmem [resolvable:$true] %s131
          %137 = dma.hbm_to_vmem [thread:$0]  %s1, 4096, %s132, [#allocation6], 64, 64, 4
        $region16: #{tpu_custom_call.1} parent=11 // pred_fallthru
          _
        // Predicated region
        $region17: #{tpu_custom_call.1} parent=11 // pred_check
          %p138 = pneg %p84
        $region18: #{tpu_custom_call.1} parent=11 // pred_check_branch
          %140 = sbr.rel (%p138) target = $region20
        $region19: #{tpu_custom_call.1} parent=11 // pred_region
          %s142 = ssub.s32 128, 128
          %143 = vsyncadd [#allocation6], %s142
          %s145 = sshll.u32 [#allocation7], 4
          %s146 = int_to_ptr.vmem [resolvable:$true] %s145
          %148 = dma.hbm_to_vmem [thread:$0]  %s2, 128, %s146, [#allocation6]
        $region20: #{tpu_custom_call.1} parent=11 // pred_fallthru
          _
      $region12: #{tpu_custom_call.1} parent=5 // pred_fallthru
        _
      %p149 = scmp.lt.s32.totalorder %s16, 2
      // Predicated region
      $region21: #{tpu_custom_call.1} parent=5 // pred_check
        %p150 = pneg %p149
      $region22: #{tpu_custom_call.1} parent=5 // pred_check_branch
        %152 = sbr.rel (%p150) target = $region24
      $region23: #{tpu_custom_call.1} parent=5 // pred_region
        // Predicated region
        $region25: #{tpu_custom_call.1} parent=23 // pred_check
          %p153 = pneg %p36
        $region26: #{tpu_custom_call.1} parent=23 // pred_check_branch
          %155 = sbr.rel (%p153) target = $region28
        $region27: #{tpu_custom_call.1} parent=23 // pred_region
          %s156 = sand.u32 %s26, 1
          %s157 = scalar_lea.sflag [#allocation3], %s156
          %s158 = sand.u32 %s26, 1
          %s159 = smul.addr %s158, 64
          %s160 = scalar_lea.vmem [#allocation2], %s159
          %s161 = smul.u32 16, %s16
          %s163 = ssub.s32 1024, 1024
          %164 = vsyncadd %s157, %s163
          %s165 = smul.addr %s161, 64
          %s166 = scalar_lea.hbm %s0, %s165
          %s167 = sshll.u32 %s160, 4
          %s168 = int_to_ptr.vmem [resolvable:$true] %s167
          %173 = dma.hbm_to_vmem [thread:$0]  %s166, 1024, %s168, %s157, 64, 64, 4
        $region28: #{tpu_custom_call.1} parent=23 // pred_fallthru
          _
      $region24: #{tpu_custom_call.1} parent=5 // pred_fallthru
        _
      %p174 = scmp.le.s32.totalorder 1, %s16
      %p175 = scmp.lt.s32.totalorder %s16, 3
      %p176 = pnand %p174, %p175
      %p177 = pneg %p176
      // Predicated region
      $region29: #{tpu_custom_call.1} parent=5 // pred_check
        _
      $region30: #{tpu_custom_call.1} parent=5 // pred_check_branch
        %179 = sbr.rel (%p176) target = $region32
      $region31: #{tpu_custom_call.1} parent=5 // pred_region
        %s180 = ssub.s32 %s16, 1
        %s181 = sand.u32 %s29, 1
        %s182 = scalar_lea.sflag [#allocation3], %s181
        %s183 = sand.u32 %s29, 1
        %s184 = smul.addr %s183, 64
        %s185 = scalar_lea.vmem [#allocation2], %s184
        // Predicated region
        $region33: #{tpu_custom_call.1} parent=31 // pred_check
          %p186 = pneg %p42
        $region34: #{tpu_custom_call.1} parent=31 // pred_check_branch
          %188 = sbr.rel (%p186) target = $region36
        $region35: #{tpu_custom_call.1} parent=31 // pred_region
          %189 = dma.done %s182, 1024
        $region36: #{tpu_custom_call.1} parent=31 // pred_fallthru
          _
        // Predicated region
        $region37: #{tpu_custom_call.1} parent=31 // pred_check
          %p190 = pneg %p63
        $region38: #{tpu_custom_call.1} parent=31 // pred_check_branch
          %192 = sbr.rel (%p190) target = $region40
        $region39: #{tpu_custom_call.1} parent=31 // pred_region
          %193 = dma.done [#allocation6], 4096
        $region40: #{tpu_custom_call.1} parent=31 // pred_fallthru
          _
        // Predicated region
        $region41: #{tpu_custom_call.1} parent=31 // pred_check
          %p194 = pneg %p84
        $region42: #{tpu_custom_call.1} parent=31 // pred_check_branch
          %196 = sbr.rel (%p194) target = $region44
        $region43: #{tpu_custom_call.1} parent=31 // pred_region
          %197 = dma.done [#allocation6], 128
        $region44: #{tpu_custom_call.1} parent=31 // pred_fallthru
          _
        %s198 = sand.u32 %s29, 1
        %s199 = scalar_lea.sflag [#allocation3], %s198
        %s200 = sand.u32 %s29, 1
        %s201 = smul.addr %s200, 64
        %s202 = scalar_lea.vmem [#allocation2], %s201
        %p203 = pneg %p42
        %p204 = pneg %p39
        %p205 = pneg %p63
        %p206 = pneg %p60
        %p207 = pneg %p84
        %p208 = pneg %p81
        %p209 = pneg %p110
        %p210 = pneg %p107
        %s211 = sand.u32 %s97, 1
        %s212 = scalar_lea.sflag [#allocation4], %s211
        %s213 = sand.u32 %s97, 1
        %s214 = smul.addr %s213, 64
        %s215 = scalar_lea.vmem [#allocation8], %s214
        %s216 = smul.u32 16, %s21
        %s217 = smul.u32 16, %s21
        %v219 = vld [vmem:[#allocation7] sm:$0xff]
        %v220 = vld [vmem:[%s185] sm:$0xf]
        %v221 = vld [vmem:[%s185 + $0x4] sm:$0xf]
        %v222 = vld [vmem:[%s185 + $0x8] sm:$0xf]
        %v223 = vld [vmem:[%s185 + $0xc] sm:$0xf]
        %v224 = vld [vmem:[%s185 + $0x10] sm:$0xf]
        %v225 = vld [vmem:[%s185 + $0x14] sm:$0xf]
        %v226 = vld [vmem:[%s185 + $0x18] sm:$0xf]
        %v227 = vld [vmem:[%s185 + $0x1c] sm:$0xf]
        %v228 = vld [vmem:[%s185 + $0x20] sm:$0xf]
        %v229 = vld [vmem:[%s185 + $0x24] sm:$0xf]
        %v230 = vld [vmem:[%s185 + $0x28] sm:$0xf]
        %v231 = vld [vmem:[%s185 + $0x2c] sm:$0xf]
        %v232 = vld [vmem:[%s185 + $0x30] sm:$0xf]
        %v233 = vld [vmem:[%s185 + $0x34] sm:$0xf]
        %v234 = vld [vmem:[%s185 + $0x38] sm:$0xf]
        %v235 = vld [vmem:[%s185 + $0x3c] sm:$0xf]
        %v236 = vld [vmem:[#allocation5] sm:$0xf]
        %v237 = vld [vmem:[#allocation5 + $0x4] sm:$0xf]
        %v238 = vld [vmem:[#allocation5 + $0x8] sm:$0xf]
        %v239 = vld [vmem:[#allocation5 + $0xc] sm:$0xf]
        %v240 = vld [vmem:[#allocation5 + $0x10] sm:$0xf]
        %v241 = vld [vmem:[#allocation5 + $0x14] sm:$0xf]
        %v242 = vld [vmem:[#allocation5 + $0x18] sm:$0xf]
        %v243 = vld [vmem:[#allocation5 + $0x1c] sm:$0xf]
        %v244 = vld [vmem:[#allocation5 + $0x20] sm:$0xf]
        %v245 = vld [vmem:[#allocation5 + $0x24] sm:$0xf]
        %v246 = vld [vmem:[#allocation5 + $0x28] sm:$0xf]
        %v247 = vld [vmem:[#allocation5 + $0x2c] sm:$0xf]
        %v248 = vld [vmem:[#allocation5 + $0x30] sm:$0xf]
        %v249 = vld [vmem:[#allocation5 + $0x34] sm:$0xf]
        %v250 = vld [vmem:[#allocation5 + $0x38] sm:$0xf]
        %v251 = vld [vmem:[#allocation5 + $0x3c] sm:$0xf]
        %v252 = vlaneseq
        %v253 = vshrl.u32 %v252, 7
        %v254 = vsub.s32 0, %v253
        %v255 = vrot.slane %v219, %v254
        %v272 = vunpack.c.l.b16 %v220
        %v273 = vunpack.c.l.b16 %v221
        %v274 = vunpack.c.l.b16 %v222
        %v275 = vunpack.c.l.b16 %v223
        %v276 = vunpack.c.l.b16 %v224
        %v277 = vunpack.c.l.b16 %v225
        %v278 = vunpack.c.l.b16 %v226
        %v279 = vunpack.c.l.b16 %v227
        %v280 = vunpack.c.l.b16 %v228
        %v281 = vunpack.c.l.b16 %v229
        %v282 = vunpack.c.l.b16 %v230
        %v283 = vunpack.c.l.b16 %v231
        %v284 = vunpack.c.l.b16 %v232
        %v285 = vunpack.c.l.b16 %v233
        %v286 = vunpack.c.l.b16 %v234
        %v287 = vunpack.c.l.b16 %v235
        %v288 = vpack.c.b16 %v273, %v272
        %v289 = vpack.c.b16 %v275, %v274
        %v290 = vpack.c.b16 %v277, %v276
        %v291 = vpack.c.b16 %v279, %v278
        %v292 = vpack.c.b16 %v281, %v280
        %v293 = vpack.c.b16 %v283, %v282
        %v294 = vpack.c.b16 %v285, %v284
        %v295 = vpack.c.b16 %v287, %v286
        %v320 = vunpack.c.l.b16 %v236
        %v321 = vunpack.c.l.b16 %v237
        %v322 = vunpack.c.l.b16 %v238
        %v323 = vunpack.c.l.b16 %v239
        %v324 = vunpack.c.l.b16 %v240
        %v325 = vunpack.c.l.b16 %v241
        %v326 = vunpack.c.l.b16 %v242
        %v327 = vunpack.c.l.b16 %v243
        %v328 = vunpack.c.l.b16 %v244
        %v329 = vunpack.c.l.b16 %v245
        %v330 = vunpack.c.l.b16 %v246
        %v331 = vunpack.c.l.b16 %v247
        %v332 = vunpack.c.l.b16 %v248
        %v333 = vunpack.c.l.b16 %v249
        %v334 = vunpack.c.l.b16 %v250
        %v335 = vunpack.c.l.b16 %v251
        %v336 = vpack.c.b16 %v321, %v320
        %v337 = vpack.c.b16 %v323, %v322
        %v338 = vpack.c.b16 %v325, %v324
        %v339 = vpack.c.b16 %v327, %v326
        %v340 = vpack.c.b16 %v329, %v328
        %v341 = vpack.c.b16 %v331, %v330
        %v342 = vpack.c.b16 %v333, %v332
        %v343 = vpack.c.b16 %v335, %v334
        %352 = vmatprep.subr.bf16.mxu0 0
        %353 = vmatpush1.bf16.msra.mxu0 %v336
        %354 = vmatprep.subr.bf16.mxu0 0
        %355 = vmatpush1.bf16.msra.mxu0 %v337
        %356 = vmatprep.subr.bf16.mxu0 0
        %357 = vmatpush1.bf16.msra.mxu0 %v338
        %358 = vmatprep.subr.bf16.mxu0 0
        %359 = vmatpush1.bf16.msra.mxu0 %v339
        %360 = vmatprep.subr.bf16.mxu0 0
        %361 = vmatpush1.bf16.msra.mxu0 %v340
        %362 = vmatprep.subr.bf16.mxu0 0
        %363 = vmatpush1.bf16.msra.mxu0 %v341
        %364 = vmatprep.subr.bf16.mxu0 0
        %365 = vmatpush1.bf16.msra.mxu0 %v342
        %366 = vmatprep.subr.bf16.mxu0 0
        %367 = vmatpush1.bf16.msra.mxu0 %v343
        %368 = vmatprep.subr.bf16.mxu0 0
        %369 = vmatpush1.bf16.msra.mxu0 0
        %370 = vmatprep.subr.bf16.mxu0 0
        %371 = vmatpush1.bf16.msra.mxu0 0
        %372 = vmatprep.subr.bf16.mxu0 0
        %373 = vmatpush1.bf16.msra.mxu0 0
        %374 = vmatprep.subr.bf16.mxu0 0
        %375 = vmatpush1.bf16.msra.mxu0 0
        %376 = vmatprep.subr.bf16.mxu0 0
        %377 = vmatpush1.bf16.msra.mxu0 0
        %378 = vmatprep.subr.bf16.mxu0 0
        %379 = vmatpush1.bf16.msra.mxu0 0
        %380 = vmatprep.subr.bf16.mxu0 0
        %381 = vmatpush1.bf16.msra.mxu0 0
        %382 = vmatprep.subr.bf16.mxu0 0
        %383 = vmatpush1.bf16.msra.mxu0 0
        %384 = vmatprep.mubr.bf16.mxu0 0
        %385 = vmatmul.mubr.bf16.gmra.mrb[0].mxu0 %v288
        %v386 = vpop.f32.mrb[0].mxu0
        %v387 = vadd.f32 %v255, %v386
        %v388 = vpop.f32.mrb[0].mxu0
        %v389 = vpop.f32.mrb[0].mxu0
        %v390 = vadd.f32 %v255, %v389
        %v391 = vpop.f32.mrb[0].mxu0
        %392 = vmatprep.mubr.bf16.mxu0 0
        %393 = vmatmul.mubr.bf16.gmra.mrb[0].mxu0 %v289
        %v394 = vpop.f32.mrb[0].mxu0
        %v395 = vadd.f32 %v255, %v394
        %v396 = vpop.f32.mrb[0].mxu0
        %v397 = vpop.f32.mrb[0].mxu0
        %v398 = vadd.f32 %v255, %v397
        %v399 = vpop.f32.mrb[0].mxu0
        %400 = vmatprep.mubr.bf16.mxu0 0
        %401 = vmatmul.mubr.bf16.gmra.mrb[0].mxu0 %v290
        %v402 = vpop.f32.mrb[0].mxu0
        %v403 = vadd.f32 %v255, %v402
        %v404 = vpop.f32.mrb[0].mxu0
        %v405 = vpop.f32.mrb[0].mxu0
        %v406 = vadd.f32 %v255, %v405
        %v407 = vpop.f32.mrb[0].mxu0
        %408 = vmatprep.mubr.bf16.mxu0 0
        %409 = vmatmul.mubr.bf16.gmra.mrb[0].mxu0 %v291
        %v410 = vpop.f32.mrb[0].mxu0
        %v411 = vadd.f32 %v255, %v410
        %v412 = vpop.f32.mrb[0].mxu0
        %v413 = vpop.f32.mrb[0].mxu0
        %v414 = vadd.f32 %v255, %v413
        %v415 = vpop.f32.mrb[0].mxu0
        %416 = vmatprep.mubr.bf16.mxu0 0
        %417 = vmatmul.mubr.bf16.gmra.mrb[0].mxu0 %v292
        %v418 = vpop.f32.mrb[0].mxu0
        %v419 = vadd.f32 %v255, %v418
        %v420 = vpop.f32.mrb[0].mxu0
        %v421 = vpop.f32.mrb[0].mxu0
        %v422 = vadd.f32 %v255, %v421
        %v423 = vpop.f32.mrb[0].mxu0
        %424 = vmatprep.mubr.bf16.mxu0 0
        %425 = vmatmul.mubr.bf16.gmra.mrb[0].mxu0 %v293
        %v426 = vpop.f32.mrb[0].mxu0
        %v427 = vadd.f32 %v255, %v426
        %v428 = vpop.f32.mrb[0].mxu0
        %v429 = vpop.f32.mrb[0].mxu0
        %v430 = vadd.f32 %v255, %v429
        %v431 = vpop.f32.mrb[0].mxu0
        %432 = vmatprep.mubr.bf16.mxu0 0
        %433 = vmatmul.mubr.bf16.gmra.mrb[0].mxu0 %v294
        %v434 = vpop.f32.mrb[0].mxu0
        %v435 = vadd.f32 %v255, %v434
        %v436 = vpop.f32.mrb[0].mxu0
        %v437 = vpop.f32.mrb[0].mxu0
        %v438 = vadd.f32 %v255, %v437
        %v439 = vpop.f32.mrb[0].mxu0
        %440 = vmatprep.mubr.bf16.mxu0 0
        %441 = vmatmul.mubr.bf16.gmra.mrb[0].mxu0 %v295
        %v442 = vpop.f32.mrb[0].mxu0
        %v443 = vadd.f32 %v255, %v442
        %v444 = vpop.f32.mrb[0].mxu0
        %v445 = vpop.f32.mrb[0].mxu0
        %v446 = vadd.f32 %v255, %v445
        %v447 = vpop.f32.mrb[0].mxu0
        %448 = vdwg.mxu0
        %v449 = vmax.f32 %v387, 0.0
        %v450 = vmax.f32 %v390, 0.0
        %v451 = vmax.f32 %v395, 0.0
        %v452 = vmax.f32 %v398, 0.0
        %v453 = vmax.f32 %v403, 0.0
        %v454 = vmax.f32 %v406, 0.0
        %v455 = vmax.f32 %v411, 0.0
        %v456 = vmax.f32 %v414, 0.0
        %v457 = vmax.f32 %v419, 0.0
        %v458 = vmax.f32 %v422, 0.0
        %v459 = vmax.f32 %v427, 0.0
        %v460 = vmax.f32 %v430, 0.0
        %v461 = vmax.f32 %v435, 0.0
        %v462 = vmax.f32 %v438, 0.0
        %v463 = vmax.f32 %v443, 0.0
        %v464 = vmax.f32 %v446, 0.0
        %v465 = vpack.c.bf16 %v450, %v449
        %v466 = vpack.c.bf16 %v452, %v451
        %v467 = vpack.c.bf16 %v454, %v453
        %v468 = vpack.c.bf16 %v456, %v455
        %v469 = vpack.c.bf16 %v458, %v457
        %v470 = vpack.c.bf16 %v460, %v459
        %v471 = vpack.c.bf16 %v462, %v461
        %v472 = vpack.c.bf16 %v464, %v463
        %s473 = scalar_lea.vmem [#allocation5], 64
        %v474 = vld [vmem:[%s473] sm:$0xf]
        %v475 = vld [vmem:[%s473 + $0x4] sm:$0xf]
        %v476 = vld [vmem:[%s473 + $0x8] sm:$0xf]
        %v477 = vld [vmem:[%s473 + $0xc] sm:$0xf]
        %v478 = vld [vmem:[%s473 + $0x10] sm:$0xf]
        %v479 = vld [vmem:[%s473 + $0x14] sm:$0xf]
        %v480 = vld [vmem:[%s473 + $0x18] sm:$0xf]
        %v481 = vld [vmem:[%s473 + $0x1c] sm:$0xf]
        %v482 = vld [vmem:[%s473 + $0x20] sm:$0xf]
        %v483 = vld [vmem:[%s473 + $0x24] sm:$0xf]
        %v484 = vld [vmem:[%s473 + $0x28] sm:$0xf]
        %v485 = vld [vmem:[%s473 + $0x2c] sm:$0xf]
        %v486 = vld [vmem:[%s473 + $0x30] sm:$0xf]
        %v487 = vld [vmem:[%s473 + $0x34] sm:$0xf]
        %v488 = vld [vmem:[%s473 + $0x38] sm:$0xf]
        %v489 = vld [vmem:[%s473 + $0x3c] sm:$0xf]
        %v490 = vlaneseq
        %v491 = vshrl.u32 %v490, 7
        %v492 = vsub.s32 1, %v491
        %v493 = vrot.slane %v219, %v492
        %v510 = vunpack.c.l.b16 %v474
        %v511 = vunpack.c.l.b16 %v475
        %v512 = vunpack.c.l.b16 %v476
        %v513 = vunpack.c.l.b16 %v477
        %v514 = vunpack.c.l.b16 %v478
        %v515 = vunpack.c.l.b16 %v479
        %v516 = vunpack.c.l.b16 %v480
        %v517 = vunpack.c.l.b16 %v481
        %v518 = vunpack.c.l.b16 %v482
        %v519 = vunpack.c.l.b16 %v483
        %v520 = vunpack.c.l.b16 %v484
        %v521 = vunpack.c.l.b16 %v485
        %v522 = vunpack.c.l.b16 %v486
        %v523 = vunpack.c.l.b16 %v487
        %v524 = vunpack.c.l.b16 %v488
        %v525 = vunpack.c.l.b16 %v489
        %v526 = vpack.c.b16 %v511, %v510
        %v527 = vpack.c.b16 %v513, %v512
        %v528 = vpack.c.b16 %v515, %v514
        %v529 = vpack.c.b16 %v517, %v516
        %v530 = vpack.c.b16 %v519, %v518
        %v531 = vpack.c.b16 %v521, %v520
        %v532 = vpack.c.b16 %v523, %v522
        %v533 = vpack.c.b16 %v525, %v524
        %542 = vmatprep.subr.bf16.mxu0 0
        %543 = vmatpush1.bf16.msra.mxu0 %v526
        %544 = vmatprep.subr.bf16.mxu0 0
        %545 = vmatpush1.bf16.msra.mxu0 %v527
        %546 = vmatprep.subr.bf16.mxu0 0
        %547 = vmatpush1.bf16.msra.mxu0 %v528
        %548 = vmatprep.subr.bf16.mxu0 0
        %549 = vmatpush1.bf16.msra.mxu0 %v529
        %550 = vmatprep.subr.bf16.mxu0 0
        %551 = vmatpush1.bf16.msra.mxu0 %v530
        %552 = vmatprep.subr.bf16.mxu0 0
        %553 = vmatpush1.bf16.msra.mxu0 %v531
        %554 = vmatprep.subr.bf16.mxu0 0
        %555 = vmatpush1.bf16.msra.mxu0 %v532
        %556 = vmatprep.subr.bf16.mxu0 0
        %557 = vmatpush1.bf16.msra.mxu0 %v533
        %558 = vmatprep.subr.bf16.mxu0 0
        %559 = vmatpush1.bf16.msra.mxu0 0
        %560 = vmatprep.subr.bf16.mxu0 0
        %561 = vmatpush1.bf16.msra.mxu0 0
        %562 = vmatprep.subr.bf16.mxu0 0
        %563 = vmatpush1.bf16.msra.mxu0 0
        %564 = vmatprep.subr.bf16.mxu0 0
        %565 = vmatpush1.bf16.msra.mxu0 0
        %566 = vmatprep.subr.bf16.mxu0 0
        %567 = vmatpush1.bf16.msra.mxu0 0
        %568 = vmatprep.subr.bf16.mxu0 0
        %569 = vmatpush1.bf16.msra.mxu0 0
        %570 = vmatprep.subr.bf16.mxu0 0
        %571 = vmatpush1.bf16.msra.mxu0 0
        %572 = vmatprep.subr.bf16.mxu0 0
        %573 = vmatpush1.bf16.msra.mxu0 0
        %574 = vmatprep.mubr.bf16.mxu0 0
        %575 = vmatmul.mubr.bf16.gmra.mrb[0].mxu0 %v465
        %v576 = vpop.f32.mrb[0].mxu0
        %v577 = vadd.f32 %v493, %v576
        %v578 = vpop.f32.mrb[0].mxu0
        %v579 = vpop.f32.mrb[0].mxu0
        %v580 = vadd.f32 %v493, %v579
        %v581 = vpop.f32.mrb[0].mxu0
        %582 = vmatprep.mubr.bf16.mxu0 0
        %583 = vmatmul.mubr.bf16.gmra.mrb[0].mxu0 %v466
        %v584 = vpop.f32.mrb[0].mxu0
        %v585 = vadd.f32 %v493, %v584
        %v586 = vpop.f32.mrb[0].mxu0
        %v587 = vpop.f32.mrb[0].mxu0
        %v588 = vadd.f32 %v493, %v587
        %v589 = vpop.f32.mrb[0].mxu0
        %590 = vmatprep.mubr.bf16.mxu0 0
        %591 = vmatmul.mubr.bf16.gmra.mrb[0].mxu0 %v467
        %v592 = vpop.f32.mrb[0].mxu0
        %v593 = vadd.f32 %v493, %v592
        %v594 = vpop.f32.mrb[0].mxu0
        %v595 = vpop.f32.mrb[0].mxu0
        %v596 = vadd.f32 %v493, %v595
        %v597 = vpop.f32.mrb[0].mxu0
        %598 = vmatprep.mubr.bf16.mxu0 0
        %599 = vmatmul.mubr.bf16.gmra.mrb[0].mxu0 %v468
        %v600 = vpop.f32.mrb[0].mxu0
        %v601 = vadd.f32 %v493, %v600
        %v602 = vpop.f32.mrb[0].mxu0
        %v603 = vpop.f32.mrb[0].mxu0
        %v604 = vadd.f32 %v493, %v603
        %v605 = vpop.f32.mrb[0].mxu0
        %606 = vmatprep.mubr.bf16.mxu0 0
        %607 = vmatmul.mubr.bf16.gmra.mrb[0].mxu0 %v469
        %v608 = vpop.f32.mrb[0].mxu0
        %v609 = vadd.f32 %v493, %v608
        %v610 = vpop.f32.mrb[0].mxu0
        %v611 = vpop.f32.mrb[0].mxu0
        %v612 = vadd.f32 %v493, %v611
        %v613 = vpop.f32.mrb[0].mxu0
        %614 = vmatprep.mubr.bf16.mxu0 0
        %615 = vmatmul.mubr.bf16.gmra.mrb[0].mxu0 %v470
        %v616 = vpop.f32.mrb[0].mxu0
        %v617 = vadd.f32 %v493, %v616
        %v618 = vpop.f32.mrb[0].mxu0
        %v619 = vpop.f32.mrb[0].mxu0
        %v620 = vadd.f32 %v493, %v619
        %v621 = vpop.f32.mrb[0].mxu0
        %622 = vmatprep.mubr.bf16.mxu0 0
        %623 = vmatmul.mubr.bf16.gmra.mrb[0].mxu0 %v471
        %v624 = vpop.f32.mrb[0].mxu0
        %v625 = vadd.f32 %v493, %v624
        %v626 = vpop.f32.mrb[0].mxu0
        %v627 = vpop.f32.mrb[0].mxu0
        %v628 = vadd.f32 %v493, %v627
        %v629 = vpop.f32.mrb[0].mxu0
        %630 = vmatprep.mubr.bf16.mxu0 0
        %631 = vmatmul.mubr.bf16.gmra.mrb[0].mxu0 %v472
        %v632 = vpop.f32.mrb[0].mxu0
        %v633 = vadd.f32 %v493, %v632
        %v634 = vpop.f32.mrb[0].mxu0
        %v635 = vpop.f32.mrb[0].mxu0
        %v636 = vadd.f32 %v493, %v635
        %v637 = vpop.f32.mrb[0].mxu0
        %638 = vdwg.mxu0
        %v639 = vmax.f32 %v577, 0.0
        %v640 = vmax.f32 %v580, 0.0
        %v641 = vmax.f32 %v585, 0.0
        %v642 = vmax.f32 %v588, 0.0
        %v643 = vmax.f32 %v593, 0.0
        %v644 = vmax.f32 %v596, 0.0
        %v645 = vmax.f32 %v601, 0.0
        %v646 = vmax.f32 %v604, 0.0
        %v647 = vmax.f32 %v609, 0.0
        %v648 = vmax.f32 %v612, 0.0
        %v649 = vmax.f32 %v617, 0.0
        %v650 = vmax.f32 %v620, 0.0
        %v651 = vmax.f32 %v625, 0.0
        %v652 = vmax.f32 %v628, 0.0
        %v653 = vmax.f32 %v633, 0.0
        %v654 = vmax.f32 %v636, 0.0
        %v655 = vpack.c.bf16 %v640, %v639
        %v656 = vpack.c.bf16 %v642, %v641
        %v657 = vpack.c.bf16 %v644, %v643
        %v658 = vpack.c.bf16 %v646, %v645
        %v659 = vpack.c.bf16 %v648, %v647
        %v660 = vpack.c.bf16 %v650, %v649
        %v661 = vpack.c.bf16 %v652, %v651
        %v662 = vpack.c.bf16 %v654, %v653
        %s663 = scalar_lea.vmem [#allocation5], 128
        %v664 = vld [vmem:[%s663] sm:$0xf]
        %v665 = vld [vmem:[%s663 + $0x4] sm:$0xf]
        %v666 = vld [vmem:[%s663 + $0x8] sm:$0xf]
        %v667 = vld [vmem:[%s663 + $0xc] sm:$0xf]
        %v668 = vld [vmem:[%s663 + $0x10] sm:$0xf]
        %v669 = vld [vmem:[%s663 + $0x14] sm:$0xf]
        %v670 = vld [vmem:[%s663 + $0x18] sm:$0xf]
        %v671 = vld [vmem:[%s663 + $0x1c] sm:$0xf]
        %v672 = vld [vmem:[%s663 + $0x20] sm:$0xf]
        %v673 = vld [vmem:[%s663 + $0x24] sm:$0xf]
        %v674 = vld [vmem:[%s663 + $0x28] sm:$0xf]
        %v675 = vld [vmem:[%s663 + $0x2c] sm:$0xf]
        %v676 = vld [vmem:[%s663 + $0x30] sm:$0xf]
        %v677 = vld [vmem:[%s663 + $0x34] sm:$0xf]
        %v678 = vld [vmem:[%s663 + $0x38] sm:$0xf]
        %v679 = vld [vmem:[%s663 + $0x3c] sm:$0xf]
        %v680 = vlaneseq
        %v681 = vshrl.u32 %v680, 7
        %v682 = vsub.s32 2, %v681
        %v683 = vrot.slane %v219, %v682
        %v700 = vunpack.c.l.b16 %v664
        %v701 = vunpack.c.l.b16 %v665
        %v702 = vunpack.c.l.b16 %v666
        %v703 = vunpack.c.l.b16 %v667
        %v704 = vunpack.c.l.b16 %v668
        %v705 = vunpack.c.l.b16 %v669
        %v706 = vunpack.c.l.b16 %v670
        %v707 = vunpack.c.l.b16 %v671
        %v708 = vunpack.c.l.b16 %v672
        %v709 = vunpack.c.l.b16 %v673
        %v710 = vunpack.c.l.b16 %v674
        %v711 = vunpack.c.l.b16 %v675
        %v712 = vunpack.c.l.b16 %v676
        %v713 = vunpack.c.l.b16 %v677
        %v714 = vunpack.c.l.b16 %v678
        %v715 = vunpack.c.l.b16 %v679
        %v716 = vpack.c.b16 %v701, %v700
        %v717 = vpack.c.b16 %v703, %v702
        %v718 = vpack.c.b16 %v705, %v704
        %v719 = vpack.c.b16 %v707, %v706
        %v720 = vpack.c.b16 %v709, %v708
        %v721 = vpack.c.b16 %v711, %v710
        %v722 = vpack.c.b16 %v713, %v712
        %v723 = vpack.c.b16 %v715, %v714
        %732 = vmatprep.subr.bf16.mxu0 0
        %733 = vmatpush1.bf16.msra.mxu0 %v716
        %734 = vmatprep.subr.bf16.mxu0 0
        %735 = vmatpush1.bf16.msra.mxu0 %v717
        %736 = vmatprep.subr.bf16.mxu0 0
        %737 = vmatpush1.bf16.msra.mxu0 %v718
        %738 = vmatprep.subr.bf16.mxu0 0
        %739 = vmatpush1.bf16.msra.mxu0 %v719
        %740 = vmatprep.subr.bf16.mxu0 0
        %741 = vmatpush1.bf16.msra.mxu0 %v720
        %742 = vmatprep.subr.bf16.mxu0 0
        %743 = vmatpush1.bf16.msra.mxu0 %v721
        %744 = vmatprep.subr.bf16.mxu0 0
        %745 = vmatpush1.bf16.msra.mxu0 %v722
        %746 = vmatprep.subr.bf16.mxu0 0
        %747 = vmatpush1.bf16.msra.mxu0 %v723
        %748 = vmatprep.subr.bf16.mxu0 0
        %749 = vmatpush1.bf16.msra.mxu0 0
        %750 = vmatprep.subr.bf16.mxu0 0
        %751 = vmatpush1.bf16.msra.mxu0 0
        %752 = vmatprep.subr.bf16.mxu0 0
        %753 = vmatpush1.bf16.msra.mxu0 0
        %754 = vmatprep.subr.bf16.mxu0 0
        %755 = vmatpush1.bf16.msra.mxu0 0
        %756 = vmatprep.subr.bf16.mxu0 0
        %757 = vmatpush1.bf16.msra.mxu0 0
        %758 = vmatprep.subr.bf16.mxu0 0
        %759 = vmatpush1.bf16.msra.mxu0 0
        %760 = vmatprep.subr.bf16.mxu0 0
        %761 = vmatpush1.bf16.msra.mxu0 0
        %762 = vmatprep.subr.bf16.mxu0 0
        %763 = vmatpush1.bf16.msra.mxu0 0
        %764 = vmatprep.mubr.bf16.mxu0 0
        %765 = vmatmul.mubr.bf16.gmra.mrb[0].mxu0 %v655
        %v766 = vpop.f32.mrb[0].mxu0
        %v767 = vadd.f32 %v683, %v766
        %v768 = vpop.f32.mrb[0].mxu0
        %v769 = vpop.f32.mrb[0].mxu0
        %v770 = vadd.f32 %v683, %v769
        %v771 = vpop.f32.mrb[0].mxu0
        %772 = vmatprep.mubr.bf16.mxu0 0
        %773 = vmatmul.mubr.bf16.gmra.mrb[0].mxu0 %v656
        %v774 = vpop.f32.mrb[0].mxu0
        %v775 = vadd.f32 %v683, %v774
        %v776 = vpop.f32.mrb[0].mxu0
        %v777 = vpop.f32.mrb[0].mxu0
        %v778 = vadd.f32 %v683, %v777
        %v779 = vpop.f32.mrb[0].mxu0
        %780 = vmatprep.mubr.bf16.mxu0 0
        %781 = vmatmul.mubr.bf16.gmra.mrb[0].mxu0 %v657
        %v782 = vpop.f32.mrb[0].mxu0
        %v783 = vadd.f32 %v683, %v782
        %v784 = vpop.f32.mrb[0].mxu0
        %v785 = vpop.f32.mrb[0].mxu0
        %v786 = vadd.f32 %v683, %v785
        %v787 = vpop.f32.mrb[0].mxu0
        %788 = vmatprep.mubr.bf16.mxu0 0
        %789 = vmatmul.mubr.bf16.gmra.mrb[0].mxu0 %v658
        %v790 = vpop.f32.mrb[0].mxu0
        %v791 = vadd.f32 %v683, %v790
        %v792 = vpop.f32.mrb[0].mxu0
        %v793 = vpop.f32.mrb[0].mxu0
        %v794 = vadd.f32 %v683, %v793
        %v795 = vpop.f32.mrb[0].mxu0
        %796 = vmatprep.mubr.bf16.mxu0 0
        %797 = vmatmul.mubr.bf16.gmra.mrb[0].mxu0 %v659
        %v798 = vpop.f32.mrb[0].mxu0
        %v799 = vadd.f32 %v683, %v798
        %v800 = vpop.f32.mrb[0].mxu0
        %v801 = vpop.f32.mrb[0].mxu0
        %v802 = vadd.f32 %v683, %v801
        %v803 = vpop.f32.mrb[0].mxu0
        %804 = vmatprep.mubr.bf16.mxu0 0
        %805 = vmatmul.mubr.bf16.gmra.mrb[0].mxu0 %v660
        %v806 = vpop.f32.mrb[0].mxu0
        %v807 = vadd.f32 %v683, %v806
        %v808 = vpop.f32.mrb[0].mxu0
        %v809 = vpop.f32.mrb[0].mxu0
        %v810 = vadd.f32 %v683, %v809
        %v811 = vpop.f32.mrb[0].mxu0
        %812 = vmatprep.mubr.bf16.mxu0 0
        %813 = vmatmul.mubr.bf16.gmra.mrb[0].mxu0 %v661
        %v814 = vpop.f32.mrb[0].mxu0
        %v815 = vadd.f32 %v683, %v814
        %v816 = vpop.f32.mrb[0].mxu0
        %v817 = vpop.f32.mrb[0].mxu0
        %v818 = vadd.f32 %v683, %v817
        %v819 = vpop.f32.mrb[0].mxu0
        %820 = vmatprep.mubr.bf16.mxu0 0
        %821 = vmatmul.mubr.bf16.gmra.mrb[0].mxu0 %v662
        %v822 = vpop.f32.mrb[0].mxu0
        %v823 = vadd.f32 %v683, %v822
        %v824 = vpop.f32.mrb[0].mxu0
        %v825 = vpop.f32.mrb[0].mxu0
        %v826 = vadd.f32 %v683, %v825
        %v827 = vpop.f32.mrb[0].mxu0
        %828 = vdwg.mxu0
        %v829 = vmax.f32 %v767, 0.0
        %v830 = vmax.f32 %v770, 0.0
        %v831 = vmax.f32 %v775, 0.0
        %v832 = vmax.f32 %v778, 0.0
        %v833 = vmax.f32 %v783, 0.0
        %v834 = vmax.f32 %v786, 0.0
        %v835 = vmax.f32 %v791, 0.0
        %v836 = vmax.f32 %v794, 0.0
        %v837 = vmax.f32 %v799, 0.0
        %v838 = vmax.f32 %v802, 0.0
        %v839 = vmax.f32 %v807, 0.0
        %v840 = vmax.f32 %v810, 0.0
        %v841 = vmax.f32 %v815, 0.0
        %v842 = vmax.f32 %v818, 0.0
        %v843 = vmax.f32 %v823, 0.0
        %v844 = vmax.f32 %v826, 0.0
        %v845 = vpack.c.bf16 %v830, %v829
        %v846 = vpack.c.bf16 %v832, %v831
        %v847 = vpack.c.bf16 %v834, %v833
        %v848 = vpack.c.bf16 %v836, %v835
        %v849 = vpack.c.bf16 %v838, %v837
        %v850 = vpack.c.bf16 %v840, %v839
        %v851 = vpack.c.bf16 %v842, %v841
        %v852 = vpack.c.bf16 %v844, %v843
        %s853 = scalar_lea.vmem [#allocation5], 192
        %v854 = vld [vmem:[%s853] sm:$0xf]
        %v855 = vld [vmem:[%s853 + $0x4] sm:$0xf]
        %v856 = vld [vmem:[%s853 + $0x8] sm:$0xf]
        %v857 = vld [vmem:[%s853 + $0xc] sm:$0xf]
        %v858 = vld [vmem:[%s853 + $0x10] sm:$0xf]
        %v859 = vld [vmem:[%s853 + $0x14] sm:$0xf]
        %v860 = vld [vmem:[%s853 + $0x18] sm:$0xf]
        %v861 = vld [vmem:[%s853 + $0x1c] sm:$0xf]
        %v862 = vld [vmem:[%s853 + $0x20] sm:$0xf]
        %v863 = vld [vmem:[%s853 + $0x24] sm:$0xf]
        %v864 = vld [vmem:[%s853 + $0x28] sm:$0xf]
        %v865 = vld [vmem:[%s853 + $0x2c] sm:$0xf]
        %v866 = vld [vmem:[%s853 + $0x30] sm:$0xf]
        %v867 = vld [vmem:[%s853 + $0x34] sm:$0xf]
        %v868 = vld [vmem:[%s853 + $0x38] sm:$0xf]
        %v869 = vld [vmem:[%s853 + $0x3c] sm:$0xf]
        %v870 = vlaneseq
        %v871 = vshrl.u32 %v870, 7
        %v872 = vsub.s32 3, %v871
        %v873 = vrot.slane %v219, %v872
        %v890 = vunpack.c.l.b16 %v854
        %v891 = vunpack.c.l.b16 %v855
        %v892 = vunpack.c.l.b16 %v856
        %v893 = vunpack.c.l.b16 %v857
        %v894 = vunpack.c.l.b16 %v858
        %v895 = vunpack.c.l.b16 %v859
        %v896 = vunpack.c.l.b16 %v860
        %v897 = vunpack.c.l.b16 %v861
        %v898 = vunpack.c.l.b16 %v862
        %v899 = vunpack.c.l.b16 %v863
        %v900 = vunpack.c.l.b16 %v864
        %v901 = vunpack.c.l.b16 %v865
        %v902 = vunpack.c.l.b16 %v866
        %v903 = vunpack.c.l.b16 %v867
        %v904 = vunpack.c.l.b16 %v868
        %v905 = vunpack.c.l.b16 %v869
        %v906 = vpack.c.b16 %v891, %v890
        %v907 = vpack.c.b16 %v893, %v892
        %v908 = vpack.c.b16 %v895, %v894
        %v909 = vpack.c.b16 %v897, %v896
        %v910 = vpack.c.b16 %v899, %v898
        %v911 = vpack.c.b16 %v901, %v900
        %v912 = vpack.c.b16 %v903, %v902
        %v913 = vpack.c.b16 %v905, %v904
        %922 = vmatprep.subr.bf16.mxu0 0
        %923 = vmatpush1.bf16.msra.mxu0 %v906
        %924 = vmatprep.subr.bf16.mxu0 0
        %925 = vmatpush1.bf16.msra.mxu0 %v907
        %926 = vmatprep.subr.bf16.mxu0 0
        %927 = vmatpush1.bf16.msra.mxu0 %v908
        %928 = vmatprep.subr.bf16.mxu0 0
        %929 = vmatpush1.bf16.msra.mxu0 %v909
        %930 = vmatprep.subr.bf16.mxu0 0
        %931 = vmatpush1.bf16.msra.mxu0 %v910
        %932 = vmatprep.subr.bf16.mxu0 0
        %933 = vmatpush1.bf16.msra.mxu0 %v911
        %934 = vmatprep.subr.bf16.mxu0 0
        %935 = vmatpush1.bf16.msra.mxu0 %v912
        %936 = vmatprep.subr.bf16.mxu0 0
        %937 = vmatpush1.bf16.msra.mxu0 %v913
        %938 = vmatprep.subr.bf16.mxu0 0
        %939 = vmatpush1.bf16.msra.mxu0 0
        %940 = vmatprep.subr.bf16.mxu0 0
        %941 = vmatpush1.bf16.msra.mxu0 0
        %942 = vmatprep.subr.bf16.mxu0 0
        %943 = vmatpush1.bf16.msra.mxu0 0
        %944 = vmatprep.subr.bf16.mxu0 0
        %945 = vmatpush1.bf16.msra.mxu0 0
        %946 = vmatprep.subr.bf16.mxu0 0
        %947 = vmatpush1.bf16.msra.mxu0 0
        %948 = vmatprep.subr.bf16.mxu0 0
        %949 = vmatpush1.bf16.msra.mxu0 0
        %950 = vmatprep.subr.bf16.mxu0 0
        %951 = vmatpush1.bf16.msra.mxu0 0
        %952 = vmatprep.subr.bf16.mxu0 0
        %953 = vmatpush1.bf16.msra.mxu0 0
        %954 = vmatprep.mubr.bf16.mxu0 0
        %955 = vmatmul.mubr.bf16.gmra.mrb[0].mxu0 %v845
        %v956 = vpop.f32.mrb[0].mxu0
        %v957 = vadd.f32 %v873, %v956
        %v958 = vpop.f32.mrb[0].mxu0
        %v959 = vpop.f32.mrb[0].mxu0
        %v960 = vadd.f32 %v873, %v959
        %v961 = vpop.f32.mrb[0].mxu0
        %962 = vmatprep.mubr.bf16.mxu0 0
        %963 = vmatmul.mubr.bf16.gmra.mrb[0].mxu0 %v846
        %v964 = vpop.f32.mrb[0].mxu0
        %v965 = vadd.f32 %v873, %v964
        %v966 = vpop.f32.mrb[0].mxu0
        %v967 = vpop.f32.mrb[0].mxu0
        %v968 = vadd.f32 %v873, %v967
        %v969 = vpop.f32.mrb[0].mxu0
        %970 = vmatprep.mubr.bf16.mxu0 0
        %971 = vmatmul.mubr.bf16.gmra.mrb[0].mxu0 %v847
        %v972 = vpop.f32.mrb[0].mxu0
        %v973 = vadd.f32 %v873, %v972
        %v974 = vpop.f32.mrb[0].mxu0
        %v975 = vpop.f32.mrb[0].mxu0
        %v976 = vadd.f32 %v873, %v975
        %v977 = vpop.f32.mrb[0].mxu0
        %978 = vmatprep.mubr.bf16.mxu0 0
        %979 = vmatmul.mubr.bf16.gmra.mrb[0].mxu0 %v848
        %v980 = vpop.f32.mrb[0].mxu0
        %v981 = vadd.f32 %v873, %v980
        %v982 = vpop.f32.mrb[0].mxu0
        %v983 = vpop.f32.mrb[0].mxu0
        %v984 = vadd.f32 %v873, %v983
        %v985 = vpop.f32.mrb[0].mxu0
        %986 = vmatprep.mubr.bf16.mxu0 0
        %987 = vmatmul.mubr.bf16.gmra.mrb[0].mxu0 %v849
        %v988 = vpop.f32.mrb[0].mxu0
        %v989 = vadd.f32 %v873, %v988
        %v990 = vpop.f32.mrb[0].mxu0
        %v991 = vpop.f32.mrb[0].mxu0
        %v992 = vadd.f32 %v873, %v991
        %v993 = vpop.f32.mrb[0].mxu0
        %994 = vmatprep.mubr.bf16.mxu0 0
        %995 = vmatmul.mubr.bf16.gmra.mrb[0].mxu0 %v850
        %v996 = vpop.f32.mrb[0].mxu0
        %v997 = vadd.f32 %v873, %v996
        %v998 = vpop.f32.mrb[0].mxu0
        %v999 = vpop.f32.mrb[0].mxu0
        %v1000 = vadd.f32 %v873, %v999
        %v1001 = vpop.f32.mrb[0].mxu0
        %1002 = vmatprep.mubr.bf16.mxu0 0
        %1003 = vmatmul.mubr.bf16.gmra.mrb[0].mxu0 %v851
        %v1004 = vpop.f32.mrb[0].mxu0
        %v1005 = vadd.f32 %v873, %v1004
        %v1006 = vpop.f32.mrb[0].mxu0
        %v1007 = vpop.f32.mrb[0].mxu0
        %v1008 = vadd.f32 %v873, %v1007
        %v1009 = vpop.f32.mrb[0].mxu0
        %1010 = vmatprep.mubr.bf16.mxu0 0
        %1011 = vmatmul.mubr.bf16.gmra.mrb[0].mxu0 %v852
        %v1012 = vpop.f32.mrb[0].mxu0
        %v1013 = vadd.f32 %v873, %v1012
        %v1014 = vpop.f32.mrb[0].mxu0
        %v1015 = vpop.f32.mrb[0].mxu0
        %v1016 = vadd.f32 %v873, %v1015
        %v1017 = vpop.f32.mrb[0].mxu0
        %1018 = vdwg.mxu0
        %1019 = vmax.xlane.f32.xlu0 %v957
        %v1020 = vpop.xlane.xlu0 %1019
        %1021 = vmax.xlane.f32.xlu0 %v960
        %v1022 = vpop.xlane.xlu0 %1021
        %1023 = vmax.xlane.f32.xlu0 %v965
        %v1024 = vpop.xlane.xlu0 %1023
        %1025 = vmax.xlane.f32.xlu0 %v968
        %v1026 = vpop.xlane.xlu0 %1025
        %1027 = vmax.xlane.f32.xlu0 %v973
        %v1028 = vpop.xlane.xlu0 %1027
        %1029 = vmax.xlane.f32.xlu0 %v976
        %v1030 = vpop.xlane.xlu0 %1029
        %1031 = vmax.xlane.f32.xlu0 %v981
        %v1032 = vpop.xlane.xlu0 %1031
        %1033 = vmax.xlane.f32.xlu0 %v984
        %v1034 = vpop.xlane.xlu0 %1033
        %1035 = vmax.xlane.f32.xlu0 %v989
        %v1036 = vpop.xlane.xlu0 %1035
        %1037 = vmax.xlane.f32.xlu0 %v992
        %v1038 = vpop.xlane.xlu0 %1037
        %1039 = vmax.xlane.f32.xlu0 %v997
        %v1040 = vpop.xlane.xlu0 %1039
        %1041 = vmax.xlane.f32.xlu0 %v1000
        %v1042 = vpop.xlane.xlu0 %1041
        %1043 = vmax.xlane.f32.xlu0 %v1005
        %v1044 = vpop.xlane.xlu0 %1043
        %1045 = vmax.xlane.f32.xlu0 %v1008
        %v1046 = vpop.xlane.xlu0 %1045
        %1047 = vmax.xlane.f32.xlu0 %v1013
        %v1048 = vpop.xlane.xlu0 %1047
        %1049 = vmax.xlane.f32.xlu0 %v1016
        %v1050 = vpop.xlane.xlu0 %1049
        %v1051 = vsub.f32 %v957, %v1020
        %v1052 = vsub.f32 %v960, %v1022
        %v1053 = vsub.f32 %v965, %v1024
        %v1054 = vsub.f32 %v968, %v1026
        %v1055 = vsub.f32 %v973, %v1028
        %v1056 = vsub.f32 %v976, %v1030
        %v1057 = vsub.f32 %v981, %v1032
        %v1058 = vsub.f32 %v984, %v1034
        %v1059 = vsub.f32 %v989, %v1036
        %v1060 = vsub.f32 %v992, %v1038
        %v1061 = vsub.f32 %v997, %v1040
        %v1062 = vsub.f32 %v1000, %v1042
        %v1063 = vsub.f32 %v1005, %v1044
        %v1064 = vsub.f32 %v1008, %v1046
        %v1065 = vsub.f32 %v1013, %v1048
        %v1066 = vsub.f32 %v1016, %v1050
        %v1067 = vmul.f32 %v1051, 1.442695
        %v1068 = vpow.pop %v1067
        %v1069 = vmul.f32 %v1052, 1.442695
        %v1070 = vpow.pop %v1069
        %v1071 = vmul.f32 %v1053, 1.442695
        %v1072 = vpow.pop %v1071
        %v1073 = vmul.f32 %v1054, 1.442695
        %v1074 = vpow.pop %v1073
        %v1075 = vmul.f32 %v1055, 1.442695
        %v1076 = vpow.pop %v1075
        %v1077 = vmul.f32 %v1056, 1.442695
        %v1078 = vpow.pop %v1077
        %v1079 = vmul.f32 %v1057, 1.442695
        %v1080 = vpow.pop %v1079
        %v1081 = vmul.f32 %v1058, 1.442695
        %v1082 = vpow.pop %v1081
        %v1083 = vmul.f32 %v1059, 1.442695
        %v1084 = vpow.pop %v1083
        %v1085 = vmul.f32 %v1060, 1.442695
        %v1086 = vpow.pop %v1085
        %v1087 = vmul.f32 %v1061, 1.442695
        %v1088 = vpow.pop %v1087
        %v1089 = vmul.f32 %v1062, 1.442695
        %v1090 = vpow.pop %v1089
        %v1091 = vmul.f32 %v1063, 1.442695
        %v1092 = vpow.pop %v1091
        %v1093 = vmul.f32 %v1064, 1.442695
        %v1094 = vpow.pop %v1093
        %v1095 = vmul.f32 %v1065, 1.442695
        %v1096 = vpow.pop %v1095
        %v1097 = vmul.f32 %v1066, 1.442695
        %v1098 = vpow.pop %v1097
        %1099 = vadd.xlane.f32.xlu0 %v1068
        %v1100 = vpop.xlane.xlu0 %1099
        %1101 = vadd.xlane.f32.xlu0 %v1070
        %v1102 = vpop.xlane.xlu0 %1101
        %1103 = vadd.xlane.f32.xlu0 %v1072
        %v1104 = vpop.xlane.xlu0 %1103
        %1105 = vadd.xlane.f32.xlu0 %v1074
        %v1106 = vpop.xlane.xlu0 %1105
        %1107 = vadd.xlane.f32.xlu0 %v1076
        %v1108 = vpop.xlane.xlu0 %1107
        %1109 = vadd.xlane.f32.xlu0 %v1078
        %v1110 = vpop.xlane.xlu0 %1109
        %1111 = vadd.xlane.f32.xlu0 %v1080
        %v1112 = vpop.xlane.xlu0 %1111
        %1113 = vadd.xlane.f32.xlu0 %v1082
        %v1114 = vpop.xlane.xlu0 %1113
        %1115 = vadd.xlane.f32.xlu0 %v1084
        %v1116 = vpop.xlane.xlu0 %1115
        %1117 = vadd.xlane.f32.xlu0 %v1086
        %v1118 = vpop.xlane.xlu0 %1117
        %1119 = vadd.xlane.f32.xlu0 %v1088
        %v1120 = vpop.xlane.xlu0 %1119
        %1121 = vadd.xlane.f32.xlu0 %v1090
        %v1122 = vpop.xlane.xlu0 %1121
        %1123 = vadd.xlane.f32.xlu0 %v1092
        %v1124 = vpop.xlane.xlu0 %1123
        %1125 = vadd.xlane.f32.xlu0 %v1094
        %v1126 = vpop.xlane.xlu0 %1125
        %1127 = vadd.xlane.f32.xlu0 %v1096
        %v1128 = vpop.xlane.xlu0 %1127
        %1129 = vadd.xlane.f32.xlu0 %v1098
        %v1130 = vpop.xlane.xlu0 %1129
        %v1131 = vrcp.pop %v1100
        %v1132 = vrcp.pop %v1102
        %v1133 = vrcp.pop %v1104
        %v1134 = vrcp.pop %v1106
        %v1135 = vrcp.pop %v1108
        %v1136 = vrcp.pop %v1110
        %v1137 = vrcp.pop %v1112
        %v1138 = vrcp.pop %v1114
        %v1139 = vrcp.pop %v1116
        %v1140 = vrcp.pop %v1118
        %v1141 = vrcp.pop %v1120
        %v1142 = vrcp.pop %v1122
        %v1143 = vrcp.pop %v1124
        %v1144 = vrcp.pop %v1126
        %v1145 = vrcp.pop %v1128
        %v1146 = vrcp.pop %v1130
        %v1147 = vmul.f32 %v1068, %v1131
        %v1148 = vmul.f32 %v1070, %v1132
        %v1149 = vmul.f32 %v1072, %v1133
        %v1150 = vmul.f32 %v1074, %v1134
        %v1151 = vmul.f32 %v1076, %v1135
        %v1152 = vmul.f32 %v1078, %v1136
        %v1153 = vmul.f32 %v1080, %v1137
        %v1154 = vmul.f32 %v1082, %v1138
        %v1155 = vmul.f32 %v1084, %v1139
        %v1156 = vmul.f32 %v1086, %v1140
        %v1157 = vmul.f32 %v1088, %v1141
        %v1158 = vmul.f32 %v1090, %v1142
        %v1159 = vmul.f32 %v1092, %v1143
        %v1160 = vmul.f32 %v1094, %v1144
        %v1161 = vmul.f32 %v1096, %v1145
        %v1162 = vmul.f32 %v1098, %v1146
        %v1163 = vpack.c.bf16 %v1148, %v1147
        %v1164 = vpack.c.bf16 %v1150, %v1149
        %v1165 = vpack.c.bf16 %v1152, %v1151
        %v1166 = vpack.c.bf16 %v1154, %v1153
        %v1167 = vpack.c.bf16 %v1156, %v1155
        %v1168 = vpack.c.bf16 %v1158, %v1157
        %v1169 = vpack.c.bf16 %v1160, %v1159
        %v1170 = vpack.c.bf16 %v1162, %v1161
        %v1179 = vunpack.c.l.b16 %v1163
        %v1180 = vunpack.c.h.b16 %v1163
        %v1181 = vunpack.c.l.b16 %v1164
        %v1182 = vunpack.c.h.b16 %v1164
        %v1183 = vunpack.c.l.b16 %v1165
        %v1184 = vunpack.c.h.b16 %v1165
        %v1185 = vunpack.c.l.b16 %v1166
        %v1186 = vunpack.c.h.b16 %v1166
        %v1187 = vunpack.c.l.b16 %v1167
        %v1188 = vunpack.c.h.b16 %v1167
        %v1189 = vunpack.c.l.b16 %v1168
        %v1190 = vunpack.c.h.b16 %v1168
        %v1191 = vunpack.c.l.b16 %v1169
        %v1192 = vunpack.c.h.b16 %v1169
        %v1193 = vunpack.c.l.b16 %v1170
        %v1194 = vunpack.c.h.b16 %v1170
        %v1195 = vpack.c.b16 %v1179, %v1179
        %v1196 = vpack.c.b16 %v1180, %v1180
        %v1197 = vpack.c.b16 %v1181, %v1181
        %v1198 = vpack.c.b16 %v1182, %v1182
        %v1199 = vpack.c.b16 %v1183, %v1183
        %v1200 = vpack.c.b16 %v1184, %v1184
        %v1201 = vpack.c.b16 %v1185, %v1185
        %v1202 = vpack.c.b16 %v1186, %v1186
        %v1203 = vpack.c.b16 %v1187, %v1187
        %v1204 = vpack.c.b16 %v1188, %v1188
        %v1205 = vpack.c.b16 %v1189, %v1189
        %v1206 = vpack.c.b16 %v1190, %v1190
        %v1207 = vpack.c.b16 %v1191, %v1191
        %v1208 = vpack.c.b16 %v1192, %v1192
        %v1209 = vpack.c.b16 %v1193, %v1193
        %v1210 = vpack.c.b16 %v1194, %v1194
        %1227 = vst [vmem:[%s215] sm:$0xf] %v1195
        %1228 = vst [vmem:[%s215 + $0x4] sm:$0xf] %v1196
        %1229 = vst [vmem:[%s215 + $0x8] sm:$0xf] %v1197
        %1230 = vst [vmem:[%s215 + $0xc] sm:$0xf] %v1198
        %1231 = vst [vmem:[%s215 + $0x10] sm:$0xf] %v1199
        %1232 = vst [vmem:[%s215 + $0x14] sm:$0xf] %v1200
        %1233 = vst [vmem:[%s215 + $0x18] sm:$0xf] %v1201
        %1234 = vst [vmem:[%s215 + $0x1c] sm:$0xf] %v1202
        %1235 = vst [vmem:[%s215 + $0x20] sm:$0xf] %v1203
        %1236 = vst [vmem:[%s215 + $0x24] sm:$0xf] %v1204
        %1237 = vst [vmem:[%s215 + $0x28] sm:$0xf] %v1205
        %1238 = vst [vmem:[%s215 + $0x2c] sm:$0xf] %v1206
        %1239 = vst [vmem:[%s215 + $0x30] sm:$0xf] %v1207
        %1240 = vst [vmem:[%s215 + $0x34] sm:$0xf] %v1208
        %1241 = vst [vmem:[%s215 + $0x38] sm:$0xf] %v1209
        %1242 = vst [vmem:[%s215 + $0x3c] sm:$0xf] %v1210
        %s1243 = sand.u32 %s97, 1
        %s1244 = scalar_lea.sflag [#allocation4], %s1243
        %s1245 = sand.u32 %s97, 1
        %s1246 = smul.addr %s1245, 64
        %s1247 = scalar_lea.vmem [#allocation8], %s1246
        // Predicated region
        $region45: #{tpu_custom_call.1} parent=31 // pred_check
          %p1248 = pneg %p107
        $region46: #{tpu_custom_call.1} parent=31 // pred_check_branch
          %1250 = sbr.rel (%p1248) target = $region48
        $region47: #{tpu_custom_call.1} parent=31 // pred_region
          %s1251 = smul.u32 16, %s21
          %s1253 = ssub.s32 1024, 1024
          %1254 = vsyncadd %s1244, %s1253
          %s1255 = smul.addr %s1251, 64
          %s1256 = scalar_lea.hbm %s3, %s1255
          %s1257 = sshll.u32 %s1247, 4
          %s1258 = int_to_ptr.vmem [resolvable:$true] %s1257
          %1263 = dma.vmem_to_hbm [thread:$0]  %s1258, 1024, %s1256, %s1244, 64, 64, 4
        $region48: #{tpu_custom_call.1} parent=31 // pred_fallthru
          _
      $region32: #{tpu_custom_call.1} parent=5 // pred_fallthru
        _
      %p1264 = scmp.le.s32.totalorder 2, %s16
      // Predicated region
      $region49: #{tpu_custom_call.1} parent=5 // pred_check
        %p1265 = pneg %p1264
      $region50: #{tpu_custom_call.1} parent=5 // pred_check_branch
        %1267 = sbr.rel (%p1265) target = $region52
      $region51: #{tpu_custom_call.1} parent=5 // pred_region
        %s1268 = ssub.s32 %s16, 2
        // Predicated region
        $region53: #{tpu_custom_call.1} parent=51 // pred_check
          %p1269 = pneg %p113
        $region54: #{tpu_custom_call.1} parent=51 // pred_check_branch
          %1271 = sbr.rel (%p1269) target = $region56
        $region55: #{tpu_custom_call.1} parent=51 // pred_region
          %s1272 = sand.u32 %s98, 1
          %s1273 = scalar_lea.sflag [#allocation4], %s1272
          %s1274 = sand.u32 %s98, 1
          %s1275 = smul.addr %s1274, 64
          %s1276 = scalar_lea.vmem [#allocation8], %s1275
          %1277 = dma.done %s1273, 1024
        $region56: #{tpu_custom_call.1} parent=51 // pred_fallthru
          _
      $region52: #{tpu_custom_call.1} parent=5 // pred_fallthru
        _
    $region6: #{tpu_custom_call.1} parent=1 // loop_footer
      %s20 = sadd.s32 1, %s16
    $region7: #{tpu_custom_call.1} parent=1 // loop_footer_branch
      %15 = sbr.rel target = $region3
    $region8: #{tpu_custom_call.1} parent=1 // loop_exit
      _
    %1278 = vsyncpa [#allocation3], 1
    %s1279 = scalar_lea.sflag [#allocation3], 1
    %1280 = vsyncpa %s1279, 1
    %1281 = vsyncpa [#allocation6], 1
    %1282 = vsyncpa [#allocation4], 1
    %s1283 = scalar_lea.sflag [#allocation4], 1
    %1284 = vsyncpa %s1283, 1

</llo_original>
